<compile_context>
chip_gen: v5e
topology: v5e:2x2
jax: 0.10.0
libtpu: 0.0.40
codegen_flags: <defaults>
</compile_context>

<pallas_src>
import math

import jax
import jax.numpy as jnp
from jax.experimental import pallas as pl
from jax.experimental.pallas import tpu as pltpu

_LANE = 128
_SUBLANE = 8


def _round_up(x, m):
    return ((x + m - 1) // m) * m


def _xavier_uniform(key, fan_in, fan_out, dtype=jnp.float32):
    """Matches Xavier() in the PyTorch reference: U(-a, a), a = sqrt(3)*sqrt(2/(fi+fo))."""
    std = 1.0 * math.sqrt(2.0 / (fan_in + fan_out))
    a = math.sqrt(3.0) * std
    return jax.random.uniform(key, (fan_in, fan_out), dtype=dtype, minval=-a, maxval=a)


def make_params(key, inputsize):
    """MXU-friendly params.

    Layers 1-4: (W [in_dim, out_pad] bf16, b [1, out_pad] f32) where in_dim is
    the *unpadded* inputsize for layer 1 (so x needs no feature padding) and a
    128-multiple for the later layers. Layer 5 (10 -> 1) is stored as a single
    weight row w5t [8, 128] f32 (row 0 real) plus a scalar bias (1,) f32.
    All padding is zeros, so padded lanes stay exactly zero through every ReLU
    and contribute nothing to the result. Xavier uses the unpadded fan sizes.
    """
    sizes = [inputsize, 100, 150, 50, 10, 1]
    keys = jax.random.split(key, 5)
    in_dims = [inputsize] + [_round_up(s, _LANE) for s in sizes[1:4]]  # [D, 128, 256, 128]

    params = []
    for i in range(4):
        fi, fo = sizes[i], sizes[i + 1]
        fo_p = _round_up(fo, _LANE)
        w = _xavier_uniform(keys[i], fi, fo)
        w_pad = jnp.zeros((in_dims[i], fo_p), jnp.float32).at[:fi, :fo].set(w)
        params.append((w_pad.astype(jnp.bfloat16),
                       jnp.zeros((1, fo_p), jnp.float32)))        # Xavier zeros bias

    w5 = _xavier_uniform(keys[4], sizes[4], sizes[5])              # [10, 1]
    w5t = jnp.zeros((_SUBLANE, _LANE), jnp.float32).at[0, :sizes[4]].set(w5[:, 0])
    params.append((w5t, jnp.zeros((1,), jnp.float32)))             # scalar bias -> SMEM
    return params


def mnist_fc_kernel(x_ref,
                    w1_ref, b1_ref,
                    w2_ref, b2_ref,
                    w3_ref, b3_ref,
                    w4_ref, b4_ref,
                    w5t_ref, b5_ref,
                    o_ref):
    # Whole MLP per batch tile: bf16 operands on the MXU, f32 accumulation,
    # f32 elementwise (bias add / ReLU), sigmoid via EUP exp + approx reciprocal.
    def hidden(h, w_ref, b_ref):
        z = jnp.dot(h, w_ref[...], preferred_element_type=jnp.float32) + b_ref[...]
        return jnp.maximum(z, 0.0)

    h = x_ref[...].astype(jnp.bfloat16)                      # bf16 cast in-kernel (no HBM pass)
    h = hidden(h, w1_ref, b1_ref).astype(jnp.bfloat16)
    h = hidden(h, w2_ref, b2_ref).astype(jnp.bfloat16)
    h = hidden(h, w3_ref, b3_ref).astype(jnp.bfloat16)
    h4 = hidden(h, w4_ref, b4_ref)                           # [tile_b, 128] f32

    # Final 10 -> 1 layer: multiply the single real weight column (stored as an
    # [8,128] f32 row, only row 0 real) against the transposed activations so
    # the result lands batch-on-lanes -> lane-dense [1, tile_b] output row.
    logits8 = jnp.dot(w5t_ref[...], h4.T, preferred_element_type=jnp.float32)  # [8, tile_b]
    logits = logits8[0:1, :] + b5_ref[0]
    logits = jnp.clip(logits, -30.0, 30.0)       # keep exp(-logits) finite for approx recip
    sig = pl.reciprocal(1.0 + jnp.exp(-logits), approx=True)
    o_ref[...] = sig.reshape(o_ref.shape).astype(o_ref.dtype)


def _vmem_limit_bytes(tile_b, d, p_bytes):
    x_bytes = 2 * tile_b * d * 4           # f32 x tile, double-buffered
    o_bytes = 2 * tile_b * 4               # f32 out row, double-buffered
    act_bytes = 8 * tile_b * 256 * 4       # f32 intermediates / bf16 copies / transpose headroom
    total = x_bytes + o_bytes + p_bytes + act_bytes + (8 << 20)
    return int(max(total, 32 << 20))


def mnist_fc_forward(x, params, *, tile_b=2048):
    """x: [B, inputsize] float32. params: list from make_params()."""
    B, D = x.shape

    p_bytes = sum(int(w.size) * w.dtype.itemsize + int(b.size) * b.dtype.itemsize
                  for w, b in params)

    # --- batch tile selection ---
    tile_b = max(_SUBLANE, _round_up(tile_b, _SUBLANE))
    # Cap tile so double-buffered x/out + f32 intermediates + single-buffered
    # weights stay under ~44 MiB (v7x has 64 MiB VMEM per TensorCore).
    per_row = 2 * D * 4 + 2 * 4 + 8 * 256 * 4
    budget = (44 << 20) - p_bytes
    tile_b = min(tile_b, max(_SUBLANE, (budget // per_row) // _SUBLANE * _SUBLANE))
    tile_b = min(tile_b, _round_up(B, _SUBLANE))
    # Prefer >= 2 grid tiles so dimension_semantics=("parallel",) can split the
    # batch across v7x's two TensorCores.
    if B >= 2 * _SUBLANE and pl.cdiv(B, tile_b) < 2:
        tile_b = _round_up(pl.cdiv(B, 2), _SUBLANE)

    num_tiles = pl.cdiv(B, tile_b)
    b_pad = num_tiles * tile_b
    # Only pad batch rows when ragged w.r.t. the tile; no feature padding and
    # no dtype cast of x in HBM.
    x_in = x if b_pad == B else jnp.zeros((b_pad, D), x.dtype).at[:B].set(x)

    const2 = lambda i: (0, 0)
    in_specs = [pl.BlockSpec((tile_b, D), lambda i: (i, 0))]
    flat_args = [x_in]
    for li, (w, b) in enumerate(params):
        # Grid-invariant weights: VMEM-resident, single-buffered.
        in_specs.append(pl.BlockSpec(w.shape, const2, pipeline_mode=pl.Buffered(1)))
        flat_args.append(w)
        if li < 4:
            in_specs.append(pl.BlockSpec(b.shape, const2, pipeline_mode=pl.Buffered(1)))
        else:
            in_specs.append(pl.BlockSpec(memory_space=pltpu.MemorySpace.SMEM))  # scalar bias
        flat_args.append(b)

    out = pl.pallas_call(
        mnist_fc_kernel,
        out_shape=jax.ShapeDtypeStruct((num_tiles, 1, tile_b), jnp.float32),
        grid=(num_tiles,),
        in_specs=in_specs,
        out_specs=pl.BlockSpec((1, 1, tile_b), lambda i: (i, 0, 0)),
        compiler_params=pltpu.CompilerParams(
            dimension_semantics=("parallel",),
            vmem_limit_bytes=_vmem_limit_bytes(tile_b, D, p_bytes),
        ),
    )(*flat_args)

    # Lane-dense [num_tiles, 1, tile_b] rows -> true [B, 1] sigmoid output.
    return out.reshape(b_pad)[:B].reshape(B, 1)


def reference_forward(x, params):
    """Plain-JAX reference with the same bf16-operand / f32-accumulate recipe."""
    h = x.astype(jnp.bfloat16)
    for w, b in params[:3]:
        z = jnp.dot(h, w, preferred_element_type=jnp.float32) + b
        h = jnp.maximum(z, 0.0).astype(jnp.bfloat16)
    w4, b4 = params[3]
    h4 = jnp.maximum(jnp.dot(h, w4, preferred_element_type=jnp.float32) + b4, 0.0)  # f32
    w5t, b5 = params[4]
    logits = h4 @ w5t[0:1, :].T + b5[0]                       # [B, 1]
    return 1.0 / (1.0 + jnp.exp(-logits))


if __name__ == "__main__":
    key = jax.random.PRNGKey(0)
    k_x, k_p = jax.random.split(key)

    batch = 8
    inputsize = 32  # small stand-in for flattened MNIST (784)

    x = jax.random.normal(k_x, (batch, inputsize), dtype=jnp.float32)
    params = make_params(k_p, inputsize)

    out = mnist_fc_forward(x, params)
    out = jax.block_until_ready(out)

    ref = reference_forward(x, params)
    assert out.shape == (batch, 1)
    assert bool(jnp.all(jnp.isfinite(out)))
    # bf16 MXU operands + approx-reciprocal sigmoid -> loosened tolerance.
    assert jnp.allclose(out, ref, atol=5e-3, rtol=5e-3), float(jnp.max(jnp.abs(out - ref)))

    print("KERNEL_OK")
</pallas_src>

<mosaic_0001>
module attributes {stable_mosaic.version = 11 : i64} {
  func.func @mnist_fc_kernel(%arg0: i32, %arg1: memref<8x32xf32, #tpu.memory_space<vmem>>, %arg2: memref<32x128xbf16, #tpu.memory_space<vmem>>, %arg3: memref<1x128xf32, #tpu.memory_space<vmem>>, %arg4: memref<128x256xbf16, #tpu.memory_space<vmem>>, %arg5: memref<1x256xf32, #tpu.memory_space<vmem>>, %arg6: memref<256x128xbf16, #tpu.memory_space<vmem>>, %arg7: memref<1x128xf32, #tpu.memory_space<vmem>>, %arg8: memref<128x128xbf16, #tpu.memory_space<vmem>>, %arg9: memref<1x128xf32, #tpu.memory_space<vmem>>, %arg10: memref<8x128xf32, #tpu.memory_space<vmem>>, %arg11: memref<1xf32, #tpu.memory_space<smem>>, %arg12: memref<1x1x8xf32, #tpu.memory_space<vmem>>) attributes {dimension_semantics = [#tpu.dimension_semantics<parallel>], iteration_bounds = array<i64: 1>, scalar_prefetch = 0 : i64, scratch_operands = 0 : i64, tpu.core_type = #tpu.core_type<tc>, window_params = [{transform_indices = @transform_0, window_bounds = array<i64: 8, 32>}, {pipeline_mode = #tpu.pipeline_mode<synchronous>, transform_indices = @transform_1, window_bounds = array<i64: 32, 128>}, {pipeline_mode = #tpu.pipeline_mode<synchronous>, transform_indices = @transform_2, window_bounds = array<i64: 1, 128>}, {pipeline_mode = #tpu.pipeline_mode<synchronous>, transform_indices = @transform_3, window_bounds = array<i64: 128, 256>}, {pipeline_mode = #tpu.pipeline_mode<synchronous>, transform_indices = @transform_4, window_bounds = array<i64: 1, 256>}, {pipeline_mode = #tpu.pipeline_mode<synchronous>, transform_indices = @transform_5, window_bounds = array<i64: 256, 128>}, {pipeline_mode = #tpu.pipeline_mode<synchronous>, transform_indices = @transform_6, window_bounds = array<i64: 1, 128>}, {pipeline_mode = #tpu.pipeline_mode<synchronous>, transform_indices = @transform_7, window_bounds = array<i64: 128, 128>}, {pipeline_mode = #tpu.pipeline_mode<synchronous>, transform_indices = @transform_8, window_bounds = array<i64: 1, 128>}, {pipeline_mode = #tpu.pipeline_mode<synchronous>, transform_indices = @transform_9, window_bounds = array<i64: 8, 128>}, {transform_indices = @transform_10, window_bounds = array<i64: 1>}, {transform_indices = @transform_11, window_bounds = array<i64: 1, 1, 8>}]} {
    %c0 = arith.constant 0 : index
    %c0_0 = arith.constant 0 : index
    %0 = vector.load %arg1[%c0, %c0_0] : memref<8x32xf32, #tpu.memory_space<vmem>>, vector<8x32xf32>
    %1 = arith.truncf %0 : vector<8x32xf32> to vector<8x32xbf16>
    %c0_1 = arith.constant 0 : index
    %c0_2 = arith.constant 0 : index
    %2 = vector.load %arg2[%c0_1, %c0_2] : memref<32x128xbf16, #tpu.memory_space<vmem>>, vector<32x128xbf16>
    %cst = arith.constant dense<0.000000e+00> : vector<8x128xf32>
    %3 = tpu.matmul %1, %2, %cst {dimension_numbers = #tpu.dot_dimension_numbers<[1], [0], [0], [1], [0, 0, 1, 1], [], []>} : vector<8x32xbf16>, vector<32x128xbf16>, vector<8x128xf32> -> vector<8x128xf32>
    %c0_3 = arith.constant 0 : index
    %c0_4 = arith.constant 0 : index
    %4 = vector.load %arg3[%c0_3, %c0_4] : memref<1x128xf32, #tpu.memory_space<vmem>>, vector<1x128xf32>
    %5 = vector.broadcast %4 : vector<1x128xf32> to vector<8x128xf32>
    %6 = arith.addf %3, %5 : vector<8x128xf32>
    %cst_5 = arith.constant 0.000000e+00 : f32
    %7 = vector.broadcast %cst_5 : f32 to vector<8x128xf32>
    %8 = arith.maximumf %6, %7 : vector<8x128xf32>
    %9 = arith.truncf %8 : vector<8x128xf32> to vector<8x128xbf16>
    %c0_6 = arith.constant 0 : index
    %c0_7 = arith.constant 0 : index
    %10 = vector.load %arg4[%c0_6, %c0_7] : memref<128x256xbf16, #tpu.memory_space<vmem>>, vector<128x256xbf16>
    %cst_8 = arith.constant dense<0.000000e+00> : vector<8x256xf32>
    %11 = tpu.matmul %9, %10, %cst_8 {dimension_numbers = #tpu.dot_dimension_numbers<[1], [0], [0], [1], [0, 0, 1, 1], [], []>} : vector<8x128xbf16>, vector<128x256xbf16>, vector<8x256xf32> -> vector<8x256xf32>
    %c0_9 = arith.constant 0 : index
    %c0_10 = arith.constant 0 : index
    %12 = vector.load %arg5[%c0_9, %c0_10] : memref<1x256xf32, #tpu.memory_space<vmem>>, vector<1x256xf32>
    %13 = vector.broadcast %12 : vector<1x256xf32> to vector<8x256xf32>
    %14 = arith.addf %11, %13 : vector<8x256xf32>
    %cst_11 = arith.constant 0.000000e+00 : f32
    %15 = vector.broadcast %cst_11 : f32 to vector<8x256xf32>
    %16 = arith.maximumf %14, %15 : vector<8x256xf32>
    %17 = arith.truncf %16 : vector<8x256xf32> to vector<8x256xbf16>
    %c0_12 = arith.constant 0 : index
    %c0_13 = arith.constant 0 : index
    %18 = vector.load %arg6[%c0_12, %c0_13] : memref<256x128xbf16, #tpu.memory_space<vmem>>, vector<256x128xbf16>
    %cst_14 = arith.constant dense<0.000000e+00> : vector<8x128xf32>
    %19 = tpu.matmul %17, %18, %cst_14 {dimension_numbers = #tpu.dot_dimension_numbers<[1], [0], [0], [1], [0, 0, 1, 1], [], []>} : vector<8x256xbf16>, vector<256x128xbf16>, vector<8x128xf32> -> vector<8x128xf32>
    %c0_15 = arith.constant 0 : index
    %c0_16 = arith.constant 0 : index
    %20 = vector.load %arg7[%c0_15, %c0_16] : memref<1x128xf32, #tpu.memory_space<vmem>>, vector<1x128xf32>
    %21 = vector.broadcast %20 : vector<1x128xf32> to vector<8x128xf32>
    %22 = arith.addf %19, %21 : vector<8x128xf32>
    %cst_17 = arith.constant 0.000000e+00 : f32
    %23 = vector.broadcast %cst_17 : f32 to vector<8x128xf32>
    %24 = arith.maximumf %22, %23 : vector<8x128xf32>
    %25 = arith.truncf %24 : vector<8x128xf32> to vector<8x128xbf16>
    %c0_18 = arith.constant 0 : index
    %c0_19 = arith.constant 0 : index
    %26 = vector.load %arg8[%c0_18, %c0_19] : memref<128x128xbf16, #tpu.memory_space<vmem>>, vector<128x128xbf16>
    %cst_20 = arith.constant dense<0.000000e+00> : vector<8x128xf32>
    %27 = tpu.matmul %25, %26, %cst_20 {dimension_numbers = #tpu.dot_dimension_numbers<[1], [0], [0], [1], [0, 0, 1, 1], [], []>} : vector<8x128xbf16>, vector<128x128xbf16>, vector<8x128xf32> -> vector<8x128xf32>
    %c0_21 = arith.constant 0 : index
    %c0_22 = arith.constant 0 : index
    %28 = vector.load %arg9[%c0_21, %c0_22] : memref<1x128xf32, #tpu.memory_space<vmem>>, vector<1x128xf32>
    %29 = vector.broadcast %28 : vector<1x128xf32> to vector<8x128xf32>
    %30 = arith.addf %27, %29 : vector<8x128xf32>
    %cst_23 = arith.constant 0.000000e+00 : f32
    %31 = vector.broadcast %cst_23 : f32 to vector<8x128xf32>
    %32 = arith.maximumf %30, %31 : vector<8x128xf32>
    %c0_24 = arith.constant 0 : index
    %c0_25 = arith.constant 0 : index
    %33 = vector.load %arg10[%c0_24, %c0_25] : memref<8x128xf32, #tpu.memory_space<vmem>>, vector<8x128xf32>
    %34 = tpu.transpose %32, [1, 0] : vector<8x128xf32> -> vector<128x8xf32>
    %cst_26 = arith.constant dense<0.000000e+00> : vector<8x8xf32>
    %35 = tpu.matmul %33, %34, %cst_26 {dimension_numbers = #tpu.dot_dimension_numbers<[1], [0], [0], [1], [0, 0, 1, 1], [], []>} : vector<8x128xf32>, vector<128x8xf32>, vector<8x8xf32> -> vector<8x8xf32>
    %36 = vector.extract_strided_slice %35 {offsets = [0, 0], sizes = [1, 8], strides = [1, 1]} : vector<8x8xf32> to vector<1x8xf32>
    %c0_27 = arith.constant 0 : index
    %37 = memref.load %arg11[%c0_27] : memref<1xf32, #tpu.memory_space<smem>>
    %38 = vector.broadcast %37 : f32 to vector<1x8xf32>
    %39 = arith.addf %36, %38 : vector<1x8xf32>
    %cst_28 = arith.constant -3.000000e+01 : f32
    %cst_29 = arith.constant 3.000000e+01 : f32
    %40 = vector.broadcast %cst_28 : f32 to vector<1x8xf32>
    %41 = arith.maximumf %40, %39 : vector<1x8xf32>
    %42 = vector.broadcast %cst_29 : f32 to vector<1x8xf32>
    %43 = arith.minimumf %42, %41 : vector<1x8xf32>
    %cst_30 = arith.constant 0.000000e+00 : f32
    %44 = vector.broadcast %cst_30 : f32 to vector<1x8xf32>
    %45 = arith.subf %44, %43 : vector<1x8xf32>
    %46 = math.exp %45 : vector<1x8xf32>
    %cst_31 = arith.constant 1.000000e+00 : f32
    %47 = vector.broadcast %cst_31 : f32 to vector<1x8xf32>
    %48 = arith.addf %47, %46 : vector<1x8xf32>
    %49 = tpu.reciprocal %48 {approx = true} : vector<1x8xf32> -> vector<1x8xf32>
    %50 = vector.shape_cast %49 : vector<1x8xf32> to vector<1x1x8xf32>
    %c0_32 = arith.constant 0 : index
    %c0_33 = arith.constant 0 : index
    %c0_34 = arith.constant 0 : index
    %51 = vector.load %arg12[%c0_32, %c0_33, %c0_34] : memref<1x1x8xf32, #tpu.memory_space<vmem>>, vector<1x1x8xf32>
    tpu.vector_store %arg12[%c0_32, %c0_33, %c0_34], %50 {strides = array<i32>} : memref<1x1x8xf32, #tpu.memory_space<vmem>>, vector<1x1x8xf32>,
    return
  }
  func.func @transform_0(%arg0: i32) -> (i32, i32) {
    %c0_i32 = arith.constant 0 : i32
    %c0_i32_0 = arith.constant 0 : i32
    return %arg0, %c0_i32 : i32, i32
  }
  func.func @transform_1(%arg0: i32) -> (i32, i32) {
    %c0_i32 = arith.constant 0 : i32
    %c0_i32_0 = arith.constant 0 : i32
    %c0_i32_1 = arith.constant 0 : i32
    return %c0_i32, %c0_i32_0 : i32, i32
  }
  func.func @transform_2(%arg0: i32) -> (i32, i32) {
    %c0_i32 = arith.constant 0 : i32
    %c0_i32_0 = arith.constant 0 : i32
    %c0_i32_1 = arith.constant 0 : i32
    return %c0_i32, %c0_i32_0 : i32, i32
  }
  func.func @transform_3(%arg0: i32) -> (i32, i32) {
    %c0_i32 = arith.constant 0 : i32
    %c0_i32_0 = arith.constant 0 : i32
    %c0_i32_1 = arith.constant 0 : i32
    return %c0_i32, %c0_i32_0 : i32, i32
  }
  func.func @transform_4(%arg0: i32) -> (i32, i32) {
    %c0_i32 = arith.constant 0 : i32
    %c0_i32_0 = arith.constant 0 : i32
    %c0_i32_1 = arith.constant 0 : i32
    return %c0_i32, %c0_i32_0 : i32, i32
  }
  func.func @transform_5(%arg0: i32) -> (i32, i32) {
    %c0_i32 = arith.constant 0 : i32
    %c0_i32_0 = arith.constant 0 : i32
    %c0_i32_1 = arith.constant 0 : i32
    return %c0_i32, %c0_i32_0 : i32, i32
  }
  func.func @transform_6(%arg0: i32) -> (i32, i32) {
    %c0_i32 = arith.constant 0 : i32
    %c0_i32_0 = arith.constant 0 : i32
    %c0_i32_1 = arith.constant 0 : i32
    return %c0_i32, %c0_i32_0 : i32, i32
  }
  func.func @transform_7(%arg0: i32) -> (i32, i32) {
    %c0_i32 = arith.constant 0 : i32
    %c0_i32_0 = arith.constant 0 : i32
    %c0_i32_1 = arith.constant 0 : i32
    return %c0_i32, %c0_i32_0 : i32, i32
  }
  func.func @transform_8(%arg0: i32) -> (i32, i32) {
    %c0_i32 = arith.constant 0 : i32
    %c0_i32_0 = arith.constant 0 : i32
    %c0_i32_1 = arith.constant 0 : i32
    return %c0_i32, %c0_i32_0 : i32, i32
  }
  func.func @transform_9(%arg0: i32) -> (i32, i32) {
    %c0_i32 = arith.constant 0 : i32
    %c0_i32_0 = arith.constant 0 : i32
    %c0_i32_1 = arith.constant 0 : i32
    return %c0_i32, %c0_i32_0 : i32, i32
  }
  func.func @transform_10(%arg0: i32) -> i32 {
    %c0_i32 = arith.constant 0 : i32
    %c0_i32_0 = arith.constant 0 : i32
    return %c0_i32 : i32
  }
  func.func @transform_11(%arg0: i32) -> (i32, i32, i32) {
    %c0_i32 = arith.constant 0 : i32
    %c0_i32_0 = arith.constant 0 : i32
    %c0_i32_1 = arith.constant 0 : i32
    return %arg0, %c0_i32, %c0_i32_0 : i32, i32, i32
  }
}

</mosaic_0001>

<llo_original>
// kernel: tpu_custom_call.1
$region0: #{tpu_custom_call.1}
  #allocation0 [shape = 'u32[]', space=smem, size = 0x4, offset = 0x4, fixed_abs, tag = 'smem constant byte address 0x4 - core index']
  #allocation1 [shape = 'u32[72,128]{1,0:T(1,128)}', space=vmem, size = 0x9000, scoped, tag = 'internal scratch']
  #allocation2 [shape = 'f32[1]{0:T(128)S(6)}', space=smem, size = 0x200, scoped, tag = 'scoped memory for tpu_custom_call.1']
  %s0 = inlined_call_operand.hbm [shape: f32[8,32], index: 0, kind: input, shape index: {}]
  %s1 = inlined_call_operand.hbm [shape: bf16[32,128], index: 1, kind: input, shape index: {}]
  %s2 = inlined_call_operand.hbm [shape: f32[1,128], index: 2, kind: input, shape index: {}]
  %s3 = inlined_call_operand.hbm [shape: bf16[128,256], index: 3, kind: input, shape index: {}]
  %s4 = inlined_call_operand.vmem [shape: f32[1,256], index: 4, kind: input, shape index: {}]
  %s5 = inlined_call_operand.hbm [shape: bf16[256,128], index: 5, kind: input, shape index: {}]
  %s6 = inlined_call_operand.hbm [shape: f32[1,128], index: 6, kind: input, shape index: {}]
  %s7 = inlined_call_operand.hbm [shape: bf16[128,128], index: 7, kind: input, shape index: {}]
  %s8 = inlined_call_operand.hbm [shape: f32[1,128], index: 8, kind: input, shape index: {}]
  %s9 = inlined_call_operand.vmem [shape: f32[8,128], index: 9, kind: input, shape index: {}]
  %s10 = inlined_call_operand.<no memory space> [shape: f32[1], index: 10, kind: input, shape index: {}]
  %s11 = inlined_call_operand.hbm [shape: f32[1,1,8], index: 11, kind: output, shape index: {}]
  %s12 = sld [smem:[#allocation0]]
  $region86: #{tpu_custom_call.1} parent=0
    _
  %s14 = ssub.s32 1, %s12
  %s15 = scalar_select 0, %s14, %s12
  %16 = sst [smem:[#allocation2]] %s10
  $region1: #{tpu_custom_call.1} parent=0
    #allocation3 [shape = 'u8[4096]{0}', space=vmem, size = 0x1000, scoped, tag = 'input window, operand 0, single buffered']
    #allocation4 [shape = 's32[1]{0}', space=sflag, size = 0x4, scoped, tag = 'scoped memory for tpu_custom_call.1']
    #allocation5 [shape = 's32[1]{0}', space=sflag, size = 0x4, scoped, tag = 'scoped memory for tpu_custom_call.1']
    #allocation6 [shape = 'u8[8192]{0}', space=vmem, size = 0x2000, scoped, tag = 'input window, operand 1, single buffered']
    #allocation7 [shape = 's32[1]{0}', space=sflag, size = 0x4, scoped, tag = 'scoped memory for tpu_custom_call.1']
    #allocation8 [shape = 'u8[512]{0}', space=vmem, size = 0x400, scoped, tag = 'input window, operand 2, single buffered']
    #allocation9 [shape = 'u8[65536]{0}', space=vmem, size = 0x10000, scoped, tag = 'input window, operand 3, single buffered']
    #allocation10 [shape = 's32[1]{0}', space=sflag, size = 0x4, scoped, tag = 'scoped memory for tpu_custom_call.1']
    #allocation11 [shape = 'u8[65536]{0}', space=vmem, size = 0x10000, scoped, tag = 'input window, operand 5, single buffered']
    #allocation12 [shape = 'u8[512]{0}', space=vmem, size = 0x400, scoped, tag = 'input window, operand 6, single buffered']
    #allocation13 [shape = 's32[1]{0}', space=sflag, size = 0x4, scoped, tag = 'scoped memory for tpu_custom_call.1']
    #allocation14 [shape = 'u8[32768]{0}', space=vmem, size = 0x8000, scoped, tag = 'input window, operand 7, single buffered']
    #allocation15 [shape = 'u8[512]{0}', space=vmem, size = 0x400, scoped, tag = 'input window, operand 8, single buffered']
    #allocation16 [shape = 's32[1]{0}', space=sflag, size = 0x4, scoped, tag = 'scoped memory for tpu_custom_call.1']
    #allocation17 [shape = 'u8[512]{0}', space=vmem, size = 0x400, scoped, tag = 'output window, operand 0, single buffered']
    %17 = vsyncpa [#allocation4], 0
    %18 = vsyncpa [#allocation7], 0
    %19 = vsyncpa [#allocation10], 0
    %20 = vsyncpa [#allocation13], 0
    %21 = vsyncpa [#allocation16], 0
    %22 = vsyncpa [#allocation5], 0
    // Predicated region
    $region2: #{tpu_custom_call.1} parent=1 // pred_check
      _
    $region3: #{tpu_custom_call.1} parent=1 // pred_check_branch
      %24 = sbr.rel (0) target = $region5
    $region4: #{tpu_custom_call.1} parent=1 // pred_region
      %26 = vsyncadd [#allocation4], 0
      %s28 = sshll.u32 %s0, 4
      %s29 = int_to_ptr.hbm [resolvable:$true] %s28
      %s30 = sshll.u32 [#allocation3], 4
      %s31 = int_to_ptr.vmem [resolvable:$true] %s30
      %33 = dma.hbm_to_vmem [thread:$0]  %s29, 128, %s31, [#allocation4]
    $region5: #{tpu_custom_call.1} parent=1 // pred_fallthru
      _
    // Predicated region
    $region6: #{tpu_custom_call.1} parent=1 // pred_check
      _
    $region7: #{tpu_custom_call.1} parent=1 // pred_check_branch
      %35 = sbr.rel (0) target = $region9
    $region8: #{tpu_custom_call.1} parent=1 // pred_region
      %37 = vsyncadd [#allocation7], 0
      %s38 = sshll.u32 %s1, 4
      %s39 = int_to_ptr.hbm [resolvable:$true] %s38
      %s40 = sshll.u32 [#allocation6], 4
      %s41 = int_to_ptr.vmem [resolvable:$true] %s40
      %46 = dma.hbm_to_vmem [thread:$0]  %s39, 256, %s41, [#allocation7], 64, 64, 4
    $region9: #{tpu_custom_call.1} parent=1 // pred_fallthru
      _
    // Predicated region
    $region10: #{tpu_custom_call.1} parent=1 // pred_check
      _
    $region11: #{tpu_custom_call.1} parent=1 // pred_check_branch
      %48 = sbr.rel (0) target = $region13
    $region12: #{tpu_custom_call.1} parent=1 // pred_region
      %50 = vsyncadd [#allocation7], 0
      %s52 = sshll.u32 %s2, 4
      %s53 = int_to_ptr.hbm [resolvable:$true] %s52
      %s54 = sshll.u32 [#allocation8], 4
      %s55 = int_to_ptr.vmem [resolvable:$true] %s54
      %57 = dma.hbm_to_vmem [thread:$0]  %s53, 16, %s55, [#allocation7]
    $region13: #{tpu_custom_call.1} parent=1 // pred_fallthru
      _
    // Predicated region
    $region14: #{tpu_custom_call.1} parent=1 // pred_check
      _
    $region15: #{tpu_custom_call.1} parent=1 // pred_check_branch
      %59 = sbr.rel (0) target = $region17
    $region16: #{tpu_custom_call.1} parent=1 // pred_region
      %61 = vsyncadd [#allocation10], 0
      %s62 = sshll.u32 %s3, 4
      %s63 = int_to_ptr.hbm [resolvable:$true] %s62
      %s64 = sshll.u32 [#allocation9], 4
      %s65 = int_to_ptr.vmem [resolvable:$true] %s64
      %70 = dma.hbm_to_vmem [thread:$0]  %s63, 2048, %s65, [#allocation10], 128, 128, 8
    $region17: #{tpu_custom_call.1} parent=1 // pred_fallthru
      _
    // Predicated region
    $region18: #{tpu_custom_call.1} parent=1 // pred_check
      _
    $region19: #{tpu_custom_call.1} parent=1 // pred_check_branch
      %72 = sbr.rel (0) target = $region21
    $region20: #{tpu_custom_call.1} parent=1 // pred_region
      _
    $region21: #{tpu_custom_call.1} parent=1 // pred_fallthru
      _
    // Predicated region
    $region22: #{tpu_custom_call.1} parent=1 // pred_check
      _
    $region23: #{tpu_custom_call.1} parent=1 // pred_check_branch
      %74 = sbr.rel (0) target = $region25
    $region24: #{tpu_custom_call.1} parent=1 // pred_region
      %76 = vsyncadd [#allocation10], 0
      %s77 = sshll.u32 %s5, 4
      %s78 = int_to_ptr.hbm [resolvable:$true] %s77
      %s79 = sshll.u32 [#allocation11], 4
      %s80 = int_to_ptr.vmem [resolvable:$true] %s79
      %85 = dma.hbm_to_vmem [thread:$0]  %s78, 2048, %s80, [#allocation10], 64, 64, 4
    $region25: #{tpu_custom_call.1} parent=1 // pred_fallthru
      _
    // Predicated region
    $region26: #{tpu_custom_call.1} parent=1 // pred_check
      _
    $region27: #{tpu_custom_call.1} parent=1 // pred_check_branch
      %87 = sbr.rel (0) target = $region29
    $region28: #{tpu_custom_call.1} parent=1 // pred_region
      %89 = vsyncadd [#allocation13], 0
      %s91 = sshll.u32 %s6, 4
      %s92 = int_to_ptr.hbm [resolvable:$true] %s91
      %s93 = sshll.u32 [#allocation12], 4
      %s94 = int_to_ptr.vmem [resolvable:$true] %s93
      %96 = dma.hbm_to_vmem [thread:$0]  %s92, 16, %s94, [#allocation13]
    $region29: #{tpu_custom_call.1} parent=1 // pred_fallthru
      _
    // Predicated region
    $region30: #{tpu_custom_call.1} parent=1 // pred_check
      _
    $region31: #{tpu_custom_call.1} parent=1 // pred_check_branch
      %98 = sbr.rel (0) target = $region33
    $region32: #{tpu_custom_call.1} parent=1 // pred_region
      %100 = vsyncadd [#allocation13], 0
      %s101 = sshll.u32 %s7, 4
      %s102 = int_to_ptr.hbm [resolvable:$true] %s101
      %s103 = sshll.u32 [#allocation14], 4
      %s104 = int_to_ptr.vmem [resolvable:$true] %s103
      %109 = dma.hbm_to_vmem [thread:$0]  %s102, 1024, %s104, [#allocation13], 64, 64, 4
    $region33: #{tpu_custom_call.1} parent=1 // pred_fallthru
      _
    // Predicated region
    $region34: #{tpu_custom_call.1} parent=1 // pred_check
      _
    $region35: #{tpu_custom_call.1} parent=1 // pred_check_branch
      %111 = sbr.rel (0) target = $region37
    $region36: #{tpu_custom_call.1} parent=1 // pred_region
      %113 = vsyncadd [#allocation16], 0
      %s115 = sshll.u32 %s8, 4
      %s116 = int_to_ptr.hbm [resolvable:$true] %s115
      %s117 = sshll.u32 [#allocation15], 4
      %s118 = int_to_ptr.vmem [resolvable:$true] %s117
      %120 = dma.hbm_to_vmem [thread:$0]  %s116, 16, %s118, [#allocation16]
    $region37: #{tpu_custom_call.1} parent=1 // pred_fallthru
      _
    // Predicated region
    $region38: #{tpu_custom_call.1} parent=1 // pred_check
      _
    $region39: #{tpu_custom_call.1} parent=1 // pred_check_branch
      %122 = sbr.rel (0) target = $region41
    $region40: #{tpu_custom_call.1} parent=1 // pred_region
      _
    $region41: #{tpu_custom_call.1} parent=1 // pred_fallthru
      _
    // Predicated region
    $region42: #{tpu_custom_call.1} parent=1 // pred_check
      _
    $region43: #{tpu_custom_call.1} parent=1 // pred_check_branch
      %124 = sbr.rel (0) target = $region45
    $region44: #{tpu_custom_call.1} parent=1 // pred_region
      _
    $region45: #{tpu_custom_call.1} parent=1 // pred_fallthru
      _
    // Predicated region
    $region46: #{tpu_custom_call.1} parent=1 // pred_check
      _
    $region47: #{tpu_custom_call.1} parent=1 // pred_check_branch
      %126 = sbr.rel (0) target = $region49
    $region48: #{tpu_custom_call.1} parent=1 // pred_region
      %128 = dma.done [#allocation4], 128
    $region49: #{tpu_custom_call.1} parent=1 // pred_fallthru
      _
    // Predicated region
    $region50: #{tpu_custom_call.1} parent=1 // pred_check
      _
    $region51: #{tpu_custom_call.1} parent=1 // pred_check_branch
      %130 = sbr.rel (0) target = $region53
    $region52: #{tpu_custom_call.1} parent=1 // pred_region
      %132 = dma.done [#allocation7], 256
    $region53: #{tpu_custom_call.1} parent=1 // pred_fallthru
      _
    // Predicated region
    $region54: #{tpu_custom_call.1} parent=1 // pred_check
      _
    $region55: #{tpu_custom_call.1} parent=1 // pred_check_branch
      %134 = sbr.rel (0) target = $region57
    $region56: #{tpu_custom_call.1} parent=1 // pred_region
      %136 = dma.done [#allocation7], 16
    $region57: #{tpu_custom_call.1} parent=1 // pred_fallthru
      _
    // Predicated region
    $region58: #{tpu_custom_call.1} parent=1 // pred_check
      _
    $region59: #{tpu_custom_call.1} parent=1 // pred_check_branch
      %138 = sbr.rel (0) target = $region61
    $region60: #{tpu_custom_call.1} parent=1 // pred_region
      %140 = dma.done [#allocation10], 2048
    $region61: #{tpu_custom_call.1} parent=1 // pred_fallthru
      _
    // Predicated region
    $region62: #{tpu_custom_call.1} parent=1 // pred_check
      _
    $region63: #{tpu_custom_call.1} parent=1 // pred_check_branch
      %142 = sbr.rel (0) target = $region65
    $region64: #{tpu_custom_call.1} parent=1 // pred_region
      %144 = dma.done [#allocation10], 2048
    $region65: #{tpu_custom_call.1} parent=1 // pred_fallthru
      _
    // Predicated region
    $region66: #{tpu_custom_call.1} parent=1 // pred_check
      _
    $region67: #{tpu_custom_call.1} parent=1 // pred_check_branch
      %146 = sbr.rel (0) target = $region69
    $region68: #{tpu_custom_call.1} parent=1 // pred_region
      %148 = dma.done [#allocation13], 16
    $region69: #{tpu_custom_call.1} parent=1 // pred_fallthru
      _
    // Predicated region
    $region70: #{tpu_custom_call.1} parent=1 // pred_check
      _
    $region71: #{tpu_custom_call.1} parent=1 // pred_check_branch
      %150 = sbr.rel (0) target = $region73
    $region72: #{tpu_custom_call.1} parent=1 // pred_region
      %152 = dma.done [#allocation13], 1024
    $region73: #{tpu_custom_call.1} parent=1 // pred_fallthru
      _
    // Predicated region
    $region74: #{tpu_custom_call.1} parent=1 // pred_check
      _
    $region75: #{tpu_custom_call.1} parent=1 // pred_check_branch
      %154 = sbr.rel (0) target = $region77
    $region76: #{tpu_custom_call.1} parent=1 // pred_region
      %156 = dma.done [#allocation16], 16
    $region77: #{tpu_custom_call.1} parent=1 // pred_fallthru
      _
    %v158 = vld [vmem:[#allocation3] sm:$0xff]
    %v159 = vpack.c.bf16 %v158, %v158
    %v160 = vld [vmem:[#allocation6] sm:$0xf]
    %v161 = vld [vmem:[#allocation6 + $0x4] sm:$0xf]
    %v162 = vld [vmem:[#allocation6 + $0x8] sm:$0xf]
    %v163 = vld [vmem:[#allocation6 + $0xc] sm:$0xf]
    %v164 = vld [vmem:[#allocation8] sm:$0x1]
    %v166 = vperm.slane %v164, 0
    %v172 = vunpack.c.l.b16 %v160
    %v173 = vunpack.c.l.b16 %v161
    %v174 = vunpack.c.l.b16 %v162
    %v175 = vunpack.c.l.b16 %v163
    %v176 = vpack.c.b16 %v173, %v172
    %v177 = vpack.c.b16 %v175, %v174
    %vm180 = vcmask 261120
    %v182 = vsel %vm180, %v159, 0
    %184 = vmatpush.bf16.msra.mxu0 0
    %185 = vmatpush.bf16.msra.mxu0 0
    %186 = vmatpush.bf16.msra.mxu0 0
    %187 = vmatpush.bf16.msra.mxu0 0
    %188 = vmatpush.bf16.msra.mxu0 0
    %189 = vmatpush.bf16.msra.mxu0 0
    %190 = vmatpush.bf16.msra.mxu0 %v177
    %191 = vmatpush.bf16.msra.mxu0 %v176
    %192 = vmatmul.bf16.gmra.mxu0 %v182
    %v193 = vpop.f32.mrf.mxu0
    %v194 = vadd.f32 %v166, %v193
    %v195 = vpop.f32.mrf.mxu0
    %196 = vdwg.mxu0
    %v197 = vmax.f32 %v194, 0.0
    %v198 = vpack.c.bf16 %v197, %v197
    %v199 = vld [vmem:[#allocation9] sm:$0xff]
    %v200 = vld [vmem:[#allocation9 + $0x8] sm:$0xff]
    %v201 = vld [vmem:[#allocation9 + $0x10] sm:$0xff]
    %v202 = vld [vmem:[#allocation9 + $0x18] sm:$0xff]
    %v203 = vld [vmem:[#allocation9 + $0x20] sm:$0xff]
    %v204 = vld [vmem:[#allocation9 + $0x28] sm:$0xff]
    %v205 = vld [vmem:[#allocation9 + $0x30] sm:$0xff]
    %v206 = vld [vmem:[#allocation9 + $0x38] sm:$0xff]
    %v207 = vld [vmem:[#allocation9 + $0x40] sm:$0xff]
    %v208 = vld [vmem:[#allocation9 + $0x48] sm:$0xff]
    %v209 = vld [vmem:[#allocation9 + $0x50] sm:$0xff]
    %v210 = vld [vmem:[#allocation9 + $0x58] sm:$0xff]
    %v211 = vld [vmem:[#allocation9 + $0x60] sm:$0xff]
    %v212 = vld [vmem:[#allocation9 + $0x68] sm:$0xff]
    %v213 = vld [vmem:[#allocation9 + $0x70] sm:$0xff]
    %v214 = vld [vmem:[#allocation9 + $0x78] sm:$0xff]
    %v215 = vld [vmem:[%s4] sm:$0x3]
    %v217 = vperm.slane %v215, 0
    %v218 = vperm.slane %v215, 1
    %v237 = vunpack.c.l.b16 %v199
    %v238 = vunpack.c.h.b16 %v199
    %v239 = vunpack.c.l.b16 %v200
    %v240 = vunpack.c.h.b16 %v200
    %v241 = vunpack.c.l.b16 %v201
    %v242 = vunpack.c.h.b16 %v201
    %v243 = vunpack.c.l.b16 %v202
    %v244 = vunpack.c.h.b16 %v202
    %v245 = vunpack.c.l.b16 %v203
    %v246 = vunpack.c.h.b16 %v203
    %v247 = vunpack.c.l.b16 %v204
    %v248 = vunpack.c.h.b16 %v204
    %v249 = vunpack.c.l.b16 %v205
    %v250 = vunpack.c.h.b16 %v205
    %v251 = vunpack.c.l.b16 %v206
    %v252 = vunpack.c.h.b16 %v206
    %v253 = vunpack.c.l.b16 %v207
    %v254 = vunpack.c.h.b16 %v207
    %v255 = vunpack.c.l.b16 %v208
    %v256 = vunpack.c.h.b16 %v208
    %v257 = vunpack.c.l.b16 %v209
    %v258 = vunpack.c.h.b16 %v209
    %v259 = vunpack.c.l.b16 %v210
    %v260 = vunpack.c.h.b16 %v210
    %v261 = vunpack.c.l.b16 %v211
    %v262 = vunpack.c.h.b16 %v211
    %v263 = vunpack.c.l.b16 %v212
    %v264 = vunpack.c.h.b16 %v212
    %v265 = vunpack.c.l.b16 %v213
    %v266 = vunpack.c.h.b16 %v213
    %v267 = vunpack.c.l.b16 %v214
    %v268 = vunpack.c.h.b16 %v214
    %v269 = vpack.c.b16 %v239, %v237
    %v270 = vpack.c.b16 %v240, %v238
    %v271 = vpack.c.b16 %v243, %v241
    %v272 = vpack.c.b16 %v244, %v242
    %v273 = vpack.c.b16 %v247, %v245
    %v274 = vpack.c.b16 %v248, %v246
    %v275 = vpack.c.b16 %v251, %v249
    %v276 = vpack.c.b16 %v252, %v250
    %v277 = vpack.c.b16 %v255, %v253
    %v278 = vpack.c.b16 %v256, %v254
    %v279 = vpack.c.b16 %v259, %v257
    %v280 = vpack.c.b16 %v260, %v258
    %v281 = vpack.c.b16 %v263, %v261
    %v282 = vpack.c.b16 %v264, %v262
    %v283 = vpack.c.b16 %v267, %v265
    %v284 = vpack.c.b16 %v268, %v266
    %301 = vmatpush.bf16.msra.mxu0 %v283
    %302 = vmatpush.bf16.msra.mxu0 %v281
    %303 = vmatpush.bf16.msra.mxu0 %v279
    %304 = vmatpush.bf16.msra.mxu0 %v277
    %305 = vmatpush.bf16.msra.mxu0 %v275
    %306 = vmatpush.bf16.msra.mxu0 %v273
    %307 = vmatpush.bf16.msra.mxu0 %v271
    %308 = vmatpush.bf16.msra.mxu0 %v269
    %309 = vmatmul.bf16.gmra.mxu0 %v198
    %v310 = vpop.f32.mrf.mxu0
    %v311 = vadd.f32 %v217, %v310
    %v312 = vpop.f32.mrf.mxu0
    %313 = vdwg.mxu0
    %314 = vmatpush.bf16.msra.mxu0 %v284
    %315 = vmatpush.bf16.msra.mxu0 %v282
    %316 = vmatpush.bf16.msra.mxu0 %v280
    %317 = vmatpush.bf16.msra.mxu0 %v278
    %318 = vmatpush.bf16.msra.mxu0 %v276
    %319 = vmatpush.bf16.msra.mxu0 %v274
    %320 = vmatpush.bf16.msra.mxu0 %v272
    %321 = vmatpush.bf16.msra.mxu0 %v270
    %322 = vmatmul.bf16.gmra.mxu0 %v198
    %v323 = vpop.f32.mrf.mxu0
    %v324 = vadd.f32 %v218, %v323
    %v325 = vpop.f32.mrf.mxu0
    %326 = vdwg.mxu0
    %v327 = vmax.f32 %v311, 0.0
    %v328 = vmax.f32 %v324, 0.0
    %v329 = vpack.c.bf16 %v327, %v327
    %v330 = vpack.c.bf16 %v328, %v328
    %v331 = vld [vmem:[#allocation11] sm:$0xf]
    %v332 = vld [vmem:[#allocation11 + $0x4] sm:$0xf]
    %v333 = vld [vmem:[#allocation11 + $0x8] sm:$0xf]
    %v334 = vld [vmem:[#allocation11 + $0xc] sm:$0xf]
    %v335 = vld [vmem:[#allocation11 + $0x10] sm:$0xf]
    %v336 = vld [vmem:[#allocation11 + $0x14] sm:$0xf]
    %v337 = vld [vmem:[#allocation11 + $0x18] sm:$0xf]
    %v338 = vld [vmem:[#allocation11 + $0x1c] sm:$0xf]
    %v339 = vld [vmem:[#allocation11 + $0x20] sm:$0xf]
    %v340 = vld [vmem:[#allocation11 + $0x24] sm:$0xf]
    %v341 = vld [vmem:[#allocation11 + $0x28] sm:$0xf]
    %v342 = vld [vmem:[#allocation11 + $0x2c] sm:$0xf]
    %v343 = vld [vmem:[#allocation11 + $0x30] sm:$0xf]
    %v344 = vld [vmem:[#allocation11 + $0x34] sm:$0xf]
    %v345 = vld [vmem:[#allocation11 + $0x38] sm:$0xf]
    %v346 = vld [vmem:[#allocation11 + $0x3c] sm:$0xf]
    %v347 = vld [vmem:[#allocation11 + $0x40] sm:$0xf]
    %v348 = vld [vmem:[#allocation11 + $0x44] sm:$0xf]
    %v349 = vld [vmem:[#allocation11 + $0x48] sm:$0xf]
    %v350 = vld [vmem:[#allocation11 + $0x4c] sm:$0xf]
    %v351 = vld [vmem:[#allocation11 + $0x50] sm:$0xf]
    %v352 = vld [vmem:[#allocation11 + $0x54] sm:$0xf]
    %v353 = vld [vmem:[#allocation11 + $0x58] sm:$0xf]
    %v354 = vld [vmem:[#allocation11 + $0x5c] sm:$0xf]
    %v355 = vld [vmem:[#allocation11 + $0x60] sm:$0xf]
    %v356 = vld [vmem:[#allocation11 + $0x64] sm:$0xf]
    %v357 = vld [vmem:[#allocation11 + $0x68] sm:$0xf]
    %v358 = vld [vmem:[#allocation11 + $0x6c] sm:$0xf]
    %v359 = vld [vmem:[#allocation11 + $0x70] sm:$0xf]
    %v360 = vld [vmem:[#allocation11 + $0x74] sm:$0xf]
    %v361 = vld [vmem:[#allocation11 + $0x78] sm:$0xf]
    %v362 = vld [vmem:[#allocation11 + $0x7c] sm:$0xf]
    %v363 = vld [vmem:[#allocation12] sm:$0x1]
    %v365 = vperm.slane %v363, 0
    %v399 = vunpack.c.l.b16 %v331
    %v400 = vunpack.c.l.b16 %v332
    %v401 = vunpack.c.l.b16 %v333
    %v402 = vunpack.c.l.b16 %v334
    %v403 = vunpack.c.l.b16 %v335
    %v404 = vunpack.c.l.b16 %v336
    %v405 = vunpack.c.l.b16 %v337
    %v406 = vunpack.c.l.b16 %v338
    %v407 = vunpack.c.l.b16 %v339
    %v408 = vunpack.c.l.b16 %v340
    %v409 = vunpack.c.l.b16 %v341
    %v410 = vunpack.c.l.b16 %v342
    %v411 = vunpack.c.l.b16 %v343
    %v412 = vunpack.c.l.b16 %v344
    %v413 = vunpack.c.l.b16 %v345
    %v414 = vunpack.c.l.b16 %v346
    %v415 = vunpack.c.l.b16 %v347
    %v416 = vunpack.c.l.b16 %v348
    %v417 = vunpack.c.l.b16 %v349
    %v418 = vunpack.c.l.b16 %v350
    %v419 = vunpack.c.l.b16 %v351
    %v420 = vunpack.c.l.b16 %v352
    %v421 = vunpack.c.l.b16 %v353
    %v422 = vunpack.c.l.b16 %v354
    %v423 = vunpack.c.l.b16 %v355
    %v424 = vunpack.c.l.b16 %v356
    %v425 = vunpack.c.l.b16 %v357
    %v426 = vunpack.c.l.b16 %v358
    %v427 = vunpack.c.l.b16 %v359
    %v428 = vunpack.c.l.b16 %v360
    %v429 = vunpack.c.l.b16 %v361
    %v430 = vunpack.c.l.b16 %v362
    %v431 = vpack.c.b16 %v400, %v399
    %v432 = vpack.c.b16 %v402, %v401
    %v433 = vpack.c.b16 %v404, %v403
    %v434 = vpack.c.b16 %v406, %v405
    %v435 = vpack.c.b16 %v408, %v407
    %v436 = vpack.c.b16 %v410, %v409
    %v437 = vpack.c.b16 %v412, %v411
    %v438 = vpack.c.b16 %v414, %v413
    %v439 = vpack.c.b16 %v416, %v415
    %v440 = vpack.c.b16 %v418, %v417
    %v441 = vpack.c.b16 %v420, %v419
    %v442 = vpack.c.b16 %v422, %v421
    %v443 = vpack.c.b16 %v424, %v423
    %v444 = vpack.c.b16 %v426, %v425
    %v445 = vpack.c.b16 %v428, %v427
    %v446 = vpack.c.b16 %v430, %v429
    %463 = vmatpush.bf16.msra.mxu0 %v438
    %464 = vmatpush.bf16.msra.mxu0 %v437
    %465 = vmatpush.bf16.msra.mxu0 %v436
    %466 = vmatpush.bf16.msra.mxu0 %v435
    %467 = vmatpush.bf16.msra.mxu0 %v434
    %468 = vmatpush.bf16.msra.mxu0 %v433
    %469 = vmatpush.bf16.msra.mxu0 %v432
    %470 = vmatpush.bf16.msra.mxu0 %v431
    %471 = vmatmul.bf16.gmra.mxu0 %v329
    %v472 = vpop.f32.mrf.mxu0
    %v473 = vadd.f32 %v365, %v472
    %v474 = vpop.f32.mrf.mxu0
    %475 = vdwg.mxu0
    %476 = vmatpush.bf16.msra.mxu0 %v446
    %477 = vmatpush.bf16.msra.mxu0 %v445
    %478 = vmatpush.bf16.msra.mxu0 %v444
    %479 = vmatpush.bf16.msra.mxu0 %v443
    %480 = vmatpush.bf16.msra.mxu0 %v442
    %481 = vmatpush.bf16.msra.mxu0 %v441
    %482 = vmatpush.bf16.msra.mxu0 %v440
    %483 = vmatpush.bf16.msra.mxu0 %v439
    %484 = vmatmul.bf16.gmra.mxu0 %v330
    %v485 = vpop.f32.mrf.mxu0
    %v486 = vadd.f32 %v473, %v485
    %v487 = vpop.f32.mrf.mxu0
    %488 = vdwg.mxu0
    %v489 = vmax.f32 %v486, 0.0
    %v490 = vpack.c.bf16 %v489, %v489
    %v491 = vld [vmem:[#allocation14] sm:$0xf]
    %v492 = vld [vmem:[#allocation14 + $0x4] sm:$0xf]
    %v493 = vld [vmem:[#allocation14 + $0x8] sm:$0xf]
    %v494 = vld [vmem:[#allocation14 + $0xc] sm:$0xf]
    %v495 = vld [vmem:[#allocation14 + $0x10] sm:$0xf]
    %v496 = vld [vmem:[#allocation14 + $0x14] sm:$0xf]
    %v497 = vld [vmem:[#allocation14 + $0x18] sm:$0xf]
    %v498 = vld [vmem:[#allocation14 + $0x1c] sm:$0xf]
    %v499 = vld [vmem:[#allocation14 + $0x20] sm:$0xf]
    %v500 = vld [vmem:[#allocation14 + $0x24] sm:$0xf]
    %v501 = vld [vmem:[#allocation14 + $0x28] sm:$0xf]
    %v502 = vld [vmem:[#allocation14 + $0x2c] sm:$0xf]
    %v503 = vld [vmem:[#allocation14 + $0x30] sm:$0xf]
    %v504 = vld [vmem:[#allocation14 + $0x34] sm:$0xf]
    %v505 = vld [vmem:[#allocation14 + $0x38] sm:$0xf]
    %v506 = vld [vmem:[#allocation14 + $0x3c] sm:$0xf]
    %v507 = vld [vmem:[#allocation15] sm:$0x1]
    %v509 = vperm.slane %v507, 0
    %v527 = vunpack.c.l.b16 %v491
    %v528 = vunpack.c.l.b16 %v492
    %v529 = vunpack.c.l.b16 %v493
    %v530 = vunpack.c.l.b16 %v494
    %v531 = vunpack.c.l.b16 %v495
    %v532 = vunpack.c.l.b16 %v496
    %v533 = vunpack.c.l.b16 %v497
    %v534 = vunpack.c.l.b16 %v498
    %v535 = vunpack.c.l.b16 %v499
    %v536 = vunpack.c.l.b16 %v500
    %v537 = vunpack.c.l.b16 %v501
    %v538 = vunpack.c.l.b16 %v502
    %v539 = vunpack.c.l.b16 %v503
    %v540 = vunpack.c.l.b16 %v504
    %v541 = vunpack.c.l.b16 %v505
    %v542 = vunpack.c.l.b16 %v506
    %v543 = vpack.c.b16 %v528, %v527
    %v544 = vpack.c.b16 %v530, %v529
    %v545 = vpack.c.b16 %v532, %v531
    %v546 = vpack.c.b16 %v534, %v533
    %v547 = vpack.c.b16 %v536, %v535
    %v548 = vpack.c.b16 %v538, %v537
    %v549 = vpack.c.b16 %v540, %v539
    %v550 = vpack.c.b16 %v542, %v541
    %559 = vmatpush.bf16.msra.mxu0 %v550
    %560 = vmatpush.bf16.msra.mxu0 %v549
    %561 = vmatpush.bf16.msra.mxu0 %v548
    %562 = vmatpush.bf16.msra.mxu0 %v547
    %563 = vmatpush.bf16.msra.mxu0 %v546
    %564 = vmatpush.bf16.msra.mxu0 %v545
    %565 = vmatpush.bf16.msra.mxu0 %v544
    %566 = vmatpush.bf16.msra.mxu0 %v543
    %567 = vmatmul.bf16.gmra.mxu0 %v490
    %v568 = vpop.f32.mrf.mxu0
    %v569 = vadd.f32 %v509, %v568
    %v570 = vpop.f32.mrf.mxu0
    %571 = vdwg.mxu0
    %v572 = vmax.f32 %v569, 0.0
    %v573 = vld [vmem:[%s9] sm:$0xff]
    %574 = vmatpush.xpose.msra.mxu0 0.0
    %575 = vmatpush.xpose.msra.mxu0 0.0
    %576 = vmatpush.xpose.msra.mxu0 0.0
    %577 = vmatpush.xpose.msra.mxu0 0.0
    %578 = vmatpush.xpose.msra.mxu0 0.0
    %579 = vmatpush.xpose.msra.mxu0 0.0
    %580 = vmatpush.xpose.msra.mxu0 0.0
    %581 = vmatpush.xpose.msra.mxu0 0.0
    %582 = vmatpush.xpose.msra.mxu0 0.0
    %583 = vmatpush.xpose.msra.mxu0 0.0
    %584 = vmatpush.xpose.msra.mxu0 0.0
    %585 = vmatpush.xpose.msra.mxu0 0.0
    %586 = vmatpush.xpose.msra.mxu0 0.0
    %587 = vmatpush.xpose.msra.mxu0 0.0
    %588 = vmatpush.xpose.msra.mxu0 0.0
    %589 = vmatpush.xpose.msra.mxu0 %v572
    %590 = vmatmul.f32.gmra.mxu0 %v573
    %v591 = vpop.f32.mrf.mxu0
    %v592 = vadd.f32 0.0, %v591
    %593 = vdwg.mxu0
    %s594 = sld [smem:[#allocation2]]
    %v595 = vstv %s594
    %v596 = vadd.f32 %v592, %v595
    %v597 = vmax.f32 %v596, -30.0
    %v598 = vmin.f32 %v597, 30.0
    %v599 = vsub.f32 0.0, %v598
    %v600 = vmul.f32 %v599, 1.442695
    %v601 = vpow.pop %v600
    %v602 = vadd.f32 %v601, 1.0
    %v603 = vrcp.pop %v602
    %vm604 = vcmask 57344
    %605 = vst.msk [vmem:[#allocation17] sm:$0x1] %vm604, %v603
    // Predicated region
    $region78: #{tpu_custom_call.1} parent=1 // pred_check
      _
    $region79: #{tpu_custom_call.1} parent=1 // pred_check_branch
      %607 = sbr.rel (0) target = $region81
    $region80: #{tpu_custom_call.1} parent=1 // pred_region
      %609 = vsyncadd [#allocation5], 0
      %s611 = sshll.u32 [#allocation17], 4
      %s612 = int_to_ptr.vmem [resolvable:$true] %s611
      %s613 = sshll.u32 %s11, 4
      %s614 = int_to_ptr.hbm [resolvable:$true] %s613
      %616 = dma.vmem_to_hbm [thread:$0]  %s612, 16, %s614, [#allocation5]
    $region81: #{tpu_custom_call.1} parent=1 // pred_fallthru
      _
    // Predicated region
    $region82: #{tpu_custom_call.1} parent=1 // pred_check
      _
    $region83: #{tpu_custom_call.1} parent=1 // pred_check_branch
      %618 = sbr.rel (0) target = $region85
    $region84: #{tpu_custom_call.1} parent=1 // pred_region
      %620 = dma.done [#allocation5], 16
    $region85: #{tpu_custom_call.1} parent=1 // pred_fallthru
      _
    %621 = vsyncpa [#allocation4], 1
    %622 = vsyncpa [#allocation7], 1
    %623 = vsyncpa [#allocation10], 1
    %624 = vsyncpa [#allocation13], 1
    %625 = vsyncpa [#allocation16], 1
    %626 = vsyncpa [#allocation5], 1

</llo_original>
